<compile_context>
chip_gen: v7x
topology: tpu7x:2x2x1
jax: 0.10.0
libtpu: 0.0.40
codegen_flags: <defaults>
</compile_context>

<pallas_src>
import numpy as np
import jax
import jax.numpy as jnp
from jax.experimental import pallas as pl
from jax.experimental.pallas import tpu as pltpu

SMOOTH = 1e-6
LANES = 128
SUBLANES = 8
MAX_TILE_ROWS = 2048  # 2048 x 128 f32 = 1 MiB per input block per grid step


def _cdiv(a, b):
    return -(-a // b)


def _round_up(x, m):
    return _cdiv(x, m) * m


def _dice_partial_kernel(p_ref, t_ref, out_ref, acc_ref):
    """Accumulate per-(sublane, lane) partial sums of p*t, p, t in VMEM."""
    i = pl.program_id(1)

    @pl.when(i == 0)
    def _():
        acc_ref[...] = jnp.zeros_like(acc_ref)

    logits = p_ref[...].astype(jnp.float32)
    t = t_ref[...].astype(jnp.float32)
    # sigmoid via one EUP tanh (numerically robust; padded -1e4 -> exactly 0.0)
    p = 0.5 * (jnp.tanh(0.5 * logits) + 1.0)

    n_sub = p.shape[0] // SUBLANES
    p3 = p.reshape(n_sub, SUBLANES, LANES)
    t3 = t.reshape(n_sub, SUBLANES, LANES)

    # Cross-vreg (VPU) adds only; cross-lane/sublane reduction deferred to the
    # wrapper's finalize step.
    acc_ref[0] += jnp.sum(p3 * t3, axis=0)  # S_pt partials
    acc_ref[1] += jnp.sum(p3, axis=0)       # S_p  partials
    acc_ref[2] += jnp.sum(t3, axis=0)       # S_t  partials

    @pl.when(i == pl.num_programs(1) - 1)
    def _():
        out_ref[0] = acc_ref[...]


def binary_dice_loss(y_pred, y_true, smooth=SMOOTH):
    """y_pred: logits, any shape; y_true: same shape, values in {0, 1}."""
    assert y_pred.shape == y_true.shape
    total = int(np.prod(y_pred.shape))
    rows = _cdiv(total, LANES)

    # Grid sizing: near-equal big blocks (<= MAX_TILE_ROWS rows each) so the
    # per-grid-step overhead is negligible; pad only a handful of rows.
    n_blocks = max(1, _cdiv(rows, MAX_TILE_ROWS))
    n_outer = 2 if n_blocks >= 2 else 1  # v7x megacore split; no-op on v5e/v6e
    n_blocks = _round_up(n_blocks, n_outer)
    tile_rows = _round_up(_cdiv(rows, n_blocks), SUBLANES)
    rows_padded = tile_rows * n_blocks
    n_inner = n_blocks // n_outer

    flat_p = y_pred.reshape(-1)
    flat_t = y_true.reshape(-1)
    pad = rows_padded * LANES - total
    if pad:
        # logits = -1e4 -> sigmoid == 0 exactly; targets = 0:
        # padded elements contribute nothing to S_pt / S_p / S_t.
        flat_p = jnp.concatenate(
            [flat_p, jnp.full((pad,), -1e4, dtype=flat_p.dtype)])
        flat_t = jnp.concatenate(
            [flat_t, jnp.zeros((pad,), dtype=flat_t.dtype)])

    # Keep native dtype (e.g. bf16) -- cast to f32 happens inside the kernel,
    # halving HBM traffic for bf16 models.
    p2 = flat_p.reshape(rows_padded, LANES)
    t2 = flat_t.reshape(rows_padded, LANES)

    partials = pl.pallas_call(
        _dice_partial_kernel,
        out_shape=jax.ShapeDtypeStruct(
            (n_outer, 3, SUBLANES, LANES), jnp.float32),
        grid_spec=pltpu.PrefetchScalarGridSpec(
            num_scalar_prefetch=0,
            grid=(n_outer, n_inner),
            in_specs=[
                pl.BlockSpec((tile_rows, LANES),
                             lambda o, i: (o * n_inner + i, 0)),
                pl.BlockSpec((tile_rows, LANES),
                             lambda o, i: (o * n_inner + i, 0)),
            ],
            out_specs=pl.BlockSpec((1, 3, SUBLANES, LANES),
                                   lambda o, i: (o, 0, 0, 0)),
            scratch_shapes=[pltpu.VMEM((3, SUBLANES, LANES), jnp.float32)],
        ),
        compiler_params=pltpu.CompilerParams(
            dimension_semantics=("parallel", "arbitrary")),
    )(p2, t2)

    # Tiny finalize (a few hundred floats): cross-lane reduction + closed form
    # for the (1-p)/(1-t) terms:
    #   sum((1-p)(1-t)) = N - S_p - S_t + S_pt
    #   sum((1-p)+(1-t)) = 2N - S_p - S_t
    sums = jnp.sum(partials, axis=(0, 2, 3))  # [S_pt, S_p, S_t]
    s_pt, s_p, s_t = sums[0], sums[1], sums[2]
    n = jnp.float32(total)
    loss1 = (s_pt + smooth) / (s_p + s_t + smooth)
    loss2 = (n - s_p - s_t + s_pt + smooth) / (2.0 * n - s_p - s_t + smooth)
    return 1.0 - loss1 - loss2


def _reference(y_pred, y_true, smooth=SMOOTH):
    p = jax.nn.sigmoid(y_pred.astype(jnp.float32))
    t = y_true.astype(jnp.float32)
    loss1 = (jnp.sum(p * t) + smooth) / (jnp.sum(p + t) + smooth)
    loss2 = (jnp.sum((1 - p) * (1 - t)) + smooth) / (
        jnp.sum((1 - p) + (1 - t)) + smooth)
    return 1.0 - loss1 - loss2


if __name__ == "__main__":
    key = jax.random.PRNGKey(0)
    k1, k2, k3, k4 = jax.random.split(key, 4)

    # NCHW logits and binary ground truth (lane-aligned case)
    shape = (2, 4, 16, 16)
    y_pred = jax.random.normal(k1, shape, dtype=jnp.float32)
    y_true = (jax.random.uniform(k2, shape) > 0.5).astype(jnp.float32)

    loss = jax.block_until_ready(binary_dice_loss(y_pred, y_true))
    ref = jax.block_until_ready(_reference(y_pred, y_true))
    np.testing.assert_allclose(np.asarray(loss), np.asarray(ref),
                               rtol=1e-5, atol=1e-5)

    # Ragged shape exercising the masked-padding path
    shape2 = (2, 3, 17, 19)
    y_pred2 = jax.random.normal(k3, shape2, dtype=jnp.float32)
    y_true2 = (jax.random.uniform(k4, shape2) > 0.5).astype(jnp.float32)

    loss2 = jax.block_until_ready(binary_dice_loss(y_pred2, y_true2))
    ref2 = jax.block_until_ready(_reference(y_pred2, y_true2))
    np.testing.assert_allclose(np.asarray(loss2), np.asarray(ref2),
                               rtol=1e-5, atol=1e-5)

    print("KERNEL_OK")
</pallas_src>

<mosaic_0001>
module attributes {stable_mosaic.version = 11 : i64} {
  func.func @_dice_partial_kernel(%arg0: i32, %arg1: i32, %arg2: memref<16x128xf32, #tpu.memory_space<vmem>>, %arg3: memref<16x128xf32, #tpu.memory_space<vmem>>, %arg4: memref<1x3x8x128xf32, #tpu.memory_space<vmem>>, %arg5: memref<3x8x128xf32, #tpu.memory_space<vmem>>) attributes {dimension_semantics = [#tpu.dimension_semantics<parallel>, #tpu.dimension_semantics<arbitrary>], iteration_bounds = array<i64: 1, 1>, scalar_prefetch = 0 : i64, scratch_operands = 1 : i64, tpu.core_type = #tpu.core_type<tc>, window_params = [{transform_indices = @transform_0, window_bounds = array<i64: 16, 128>}, {transform_indices = @transform_1, window_bounds = array<i64: 16, 128>}, {transform_indices = @transform_2, window_bounds = array<i64: 1, 3, 8, 128>}]} {
    %c0_i32 = arith.constant 0 : i32
    %0 = arith.cmpi eq, %arg1, %c0_i32 : i32
    %1 = arith.extui %0 : i1 to i32
    %c0_i32_0 = arith.constant 0 : i32
    %2 = arith.cmpi ne, %1, %c0_i32_0 : i32
    scf.if %2 {
      %cst_27 = arith.constant 0.000000e+00 : f32
      %39 = vector.broadcast %cst_27 : f32 to vector<3x8x128xf32>
      %c0_28 = arith.constant 0 : index
      %c0_29 = arith.constant 0 : index
      %c0_30 = arith.constant 0 : index
      %40 = vector.load %arg5[%c0_28, %c0_29, %c0_30] : memref<3x8x128xf32, #tpu.memory_space<vmem>>, vector<3x8x128xf32>
      tpu.vector_store %arg5[%c0_28, %c0_29, %c0_30], %39 {strides = array<i32>} : memref<3x8x128xf32, #tpu.memory_space<vmem>>, vector<3x8x128xf32>,
    } else {
    }
    %c0 = arith.constant 0 : index
    %c0_1 = arith.constant 0 : index
    %3 = vector.load %arg2[%c0, %c0_1] : memref<16x128xf32, #tpu.memory_space<vmem>>, vector<16x128xf32>
    %c0_2 = arith.constant 0 : index
    %c0_3 = arith.constant 0 : index
    %4 = vector.load %arg3[%c0_2, %c0_3] : memref<16x128xf32, #tpu.memory_space<vmem>>, vector<16x128xf32>
    %cst = arith.constant 5.000000e-01 : f32
    %5 = vector.broadcast %cst : f32 to vector<16x128xf32>
    %6 = arith.mulf %5, %3 : vector<16x128xf32>
    %7 = math.tanh %6 : vector<16x128xf32>
    %cst_4 = arith.constant 1.000000e+00 : f32
    %8 = vector.broadcast %cst_4 : f32 to vector<16x128xf32>
    %9 = arith.addf %7, %8 : vector<16x128xf32>
    %cst_5 = arith.constant 5.000000e-01 : f32
    %10 = vector.broadcast %cst_5 : f32 to vector<16x128xf32>
    %11 = arith.mulf %10, %9 : vector<16x128xf32>
    %12 = vector.shape_cast %11 : vector<16x128xf32> to vector<2x8x128xf32>
    %13 = vector.shape_cast %4 : vector<16x128xf32> to vector<2x8x128xf32>
    %c0_6 = arith.constant 0 : index
    %c0_7 = arith.constant 0 : index
    %c0_8 = arith.constant 0 : index
    %14 = vector.load %arg5[%c0_6, %c0_7, %c0_8] : memref<3x8x128xf32, #tpu.memory_space<vmem>>, vector<1x8x128xf32>
    %15 = vector.shape_cast %14 : vector<1x8x128xf32> to vector<8x128xf32>
    %16 = arith.mulf %12, %13 : vector<2x8x128xf32>
    %cst_9 = arith.constant dense<0.000000e+00> : vector<8x128xf32>
    %17 = vector.multi_reduction <add>, %16, %cst_9 [0] : vector<2x8x128xf32> to vector<8x128xf32>
    %18 = arith.addf %15, %17 : vector<8x128xf32>
    %c0_10 = arith.constant 0 : index
    %c0_11 = arith.constant 0 : index
    %c0_12 = arith.constant 0 : index
    %19 = vector.load %arg5[%c0_10, %c0_11, %c0_12] : memref<3x8x128xf32, #tpu.memory_space<vmem>>, vector<1x8x128xf32>
    %20 = vector.shape_cast %19 : vector<1x8x128xf32> to vector<8x128xf32>
    %21 = vector.shape_cast %18 : vector<8x128xf32> to vector<1x8x128xf32>
    tpu.vector_store %arg5[%c0_10, %c0_11, %c0_12], %21 {strides = array<i32>} : memref<3x8x128xf32, #tpu.memory_space<vmem>>, vector<1x8x128xf32>,
    %c1 = arith.constant 1 : index
    %c0_13 = arith.constant 0 : index
    %c0_14 = arith.constant 0 : index
    %22 = vector.load %arg5[%c1, %c0_13, %c0_14] : memref<3x8x128xf32, #tpu.memory_space<vmem>>, vector<1x8x128xf32>
    %23 = vector.shape_cast %22 : vector<1x8x128xf32> to vector<8x128xf32>
    %cst_15 = arith.constant dense<0.000000e+00> : vector<8x128xf32>
    %24 = vector.multi_reduction <add>, %12, %cst_15 [0] : vector<2x8x128xf32> to vector<8x128xf32>
    %25 = arith.addf %23, %24 : vector<8x128xf32>
    %c1_16 = arith.constant 1 : index
    %c0_17 = arith.constant 0 : index
    %c0_18 = arith.constant 0 : index
    %26 = vector.load %arg5[%c1_16, %c0_17, %c0_18] : memref<3x8x128xf32, #tpu.memory_space<vmem>>, vector<1x8x128xf32>
    %27 = vector.shape_cast %26 : vector<1x8x128xf32> to vector<8x128xf32>
    %28 = vector.shape_cast %25 : vector<8x128xf32> to vector<1x8x128xf32>
    tpu.vector_store %arg5[%c1_16, %c0_17, %c0_18], %28 {strides = array<i32>} : memref<3x8x128xf32, #tpu.memory_space<vmem>>, vector<1x8x128xf32>,
    %c2 = arith.constant 2 : index
    %c0_19 = arith.constant 0 : index
    %c0_20 = arith.constant 0 : index
    %29 = vector.load %arg5[%c2, %c0_19, %c0_20] : memref<3x8x128xf32, #tpu.memory_space<vmem>>, vector<1x8x128xf32>
    %30 = vector.shape_cast %29 : vector<1x8x128xf32> to vector<8x128xf32>
    %cst_21 = arith.constant dense<0.000000e+00> : vector<8x128xf32>
    %31 = vector.multi_reduction <add>, %13, %cst_21 [0] : vector<2x8x128xf32> to vector<8x128xf32>
    %32 = arith.addf %30, %31 : vector<8x128xf32>
    %c2_22 = arith.constant 2 : index
    %c0_23 = arith.constant 0 : index
    %c0_24 = arith.constant 0 : index
    %33 = vector.load %arg5[%c2_22, %c0_23, %c0_24] : memref<3x8x128xf32, #tpu.memory_space<vmem>>, vector<1x8x128xf32>
    %34 = vector.shape_cast %33 : vector<1x8x128xf32> to vector<8x128xf32>
    %35 = vector.shape_cast %32 : vector<8x128xf32> to vector<1x8x128xf32>
    tpu.vector_store %arg5[%c2_22, %c0_23, %c0_24], %35 {strides = array<i32>} : memref<3x8x128xf32, #tpu.memory_space<vmem>>, vector<1x8x128xf32>,
    %c0_i32_25 = arith.constant 0 : i32
    %36 = arith.cmpi eq, %arg1, %c0_i32_25 : i32
    %37 = arith.extui %36 : i1 to i32
    %c0_i32_26 = arith.constant 0 : i32
    %38 = arith.cmpi ne, %37, %c0_i32_26 : i32
    scf.if %38 {
      %c0_27 = arith.constant 0 : index
      %c0_28 = arith.constant 0 : index
      %c0_29 = arith.constant 0 : index
      %39 = vector.load %arg5[%c0_27, %c0_28, %c0_29] : memref<3x8x128xf32, #tpu.memory_space<vmem>>, vector<3x8x128xf32>
      %c0_30 = arith.constant 0 : index
      %c0_31 = arith.constant 0 : index
      %c0_32 = arith.constant 0 : index
      %c0_33 = arith.constant 0 : index
      %40 = vector.load %arg4[%c0_30, %c0_31, %c0_32, %c0_33] : memref<1x3x8x128xf32, #tpu.memory_space<vmem>>, vector<1x3x8x128xf32>
      %41 = vector.shape_cast %40 : vector<1x3x8x128xf32> to vector<3x8x128xf32>
      %42 = vector.shape_cast %39 : vector<3x8x128xf32> to vector<1x3x8x128xf32>
      tpu.vector_store %arg4[%c0_30, %c0_31, %c0_32, %c0_33], %42 {strides = array<i32>} : memref<1x3x8x128xf32, #tpu.memory_space<vmem>>, vector<1x3x8x128xf32>,
    } else {
    }
    return
  }
  func.func @transform_0(%arg0: i32, %arg1: i32) -> (i32, i32) {
    %c1_i32 = arith.constant 1 : i32
    %0 = arith.muli %arg0, %c1_i32 : i32
    %1 = arith.addi %0, %arg1 : i32
    %c0_i32 = arith.constant 0 : i32
    %c0_i32_0 = arith.constant 0 : i32
    return %1, %c0_i32 : i32, i32
  }
  func.func @transform_1(%arg0: i32, %arg1: i32) -> (i32, i32) {
    %c1_i32 = arith.constant 1 : i32
    %0 = arith.muli %arg0, %c1_i32 : i32
    %1 = arith.addi %0, %arg1 : i32
    %c0_i32 = arith.constant 0 : i32
    %c0_i32_0 = arith.constant 0 : i32
    return %1, %c0_i32 : i32, i32
  }
  func.func @transform_2(%arg0: i32, %arg1: i32) -> (i32, i32, i32, i32) {
    %c0_i32 = arith.constant 0 : i32
    %c0_i32_0 = arith.constant 0 : i32
    %c0_i32_1 = arith.constant 0 : i32
    %c0_i32_2 = arith.constant 0 : i32
    return %arg0, %c0_i32, %c0_i32_0, %c0_i32_1 : i32, i32, i32, i32
  }
}

</mosaic_0001>

<llo_original>
// kernel: tpu_custom_call.1
$region0: #{tpu_custom_call.1}
  #allocation0 [shape = 'u32[]', space=smem, size = 0x4, offset = 0x4, fixed_abs, tag = 'smem constant byte address 0x4 - core index']
  #allocation1 [shape = 'u32[144,128]{1,0:T(1,128)}', space=vmem, size = 0x12000, scoped, tag = 'internal scratch']
  #allocation2 [shape = 'f32[3,8,128]{2,1,0:T(8,128)}', space=vmem, size = 0x3000, scoped, tag = 'scratch operand']
  %s0 = inlined_call_operand.hbm [shape: f32[16,128], index: 0, kind: input, shape index: {}]
  %s1 = inlined_call_operand.hbm [shape: f32[16,128], index: 1, kind: input, shape index: {}]
  %s2 = inlined_call_operand.hbm [shape: f32[1,3,8,128], index: 2, kind: output, shape index: {}]
  %s3 = sld [smem:[#allocation0]]
  $region34: #{tpu_custom_call.1} parent=0
    _
  %s5 = ssub.s32 1, %s3
  %s6 = scalar_select 0, %s5, %s3
  $region1: #{tpu_custom_call.1} parent=0
    #allocation3 [shape = 'u8[8192]{0}', space=vmem, size = 0x2000, scoped, tag = 'input window, operand 0, single buffered']
    #allocation4 [shape = 's32[1]{0}', space=sflag, size = 0x4, scoped, tag = 'scoped memory for tpu_custom_call.1']
    #allocation5 [shape = 's32[1]{0}', space=sflag, size = 0x4, scoped, tag = 'scoped memory for tpu_custom_call.1']
    #allocation6 [shape = 'u8[8192]{0}', space=vmem, size = 0x2000, scoped, tag = 'input window, operand 1, single buffered']
    #allocation7 [shape = 's32[1]{0}', space=sflag, size = 0x4, scoped, tag = 'scoped memory for tpu_custom_call.1']
    #allocation8 [shape = 'u8[12288]{0}', space=vmem, size = 0x3000, scoped, tag = 'output window, operand 0, single buffered']
    %7 = vsyncpa [#allocation4], 0
    %8 = vsyncpa [#allocation7], 0
    %9 = vsyncpa [#allocation5], 0
    // Predicated region
    $region2: #{tpu_custom_call.1} parent=1 // pred_check
      _
    $region3: #{tpu_custom_call.1} parent=1 // pred_check_branch
      %11 = sbr.rel (0) target = $region5
    $region4: #{tpu_custom_call.1} parent=1 // pred_region
      %s12 = sadd.s32 0, 0
      %s13 = smul.u32 2, %s12
      %s15 = ssub.s32 256, 256
      %16 = vsyncadd [#allocation4], %s15
      %s17 = smul.addr %s13, 128
      %s18 = scalar_lea.hbm %s0, %s17
      %s19 = sshll.u32 [#allocation3], 4
      %s20 = int_to_ptr.vmem [resolvable:$true] %s19
      %25 = dma.hbm_to_vmem [thread:$0]  %s18, 256, %s20, [#allocation4], 128, 128, 8
    $region5: #{tpu_custom_call.1} parent=1 // pred_fallthru
      _
    // Predicated region
    $region6: #{tpu_custom_call.1} parent=1 // pred_check
      _
    $region7: #{tpu_custom_call.1} parent=1 // pred_check_branch
      %27 = sbr.rel (0) target = $region9
    $region8: #{tpu_custom_call.1} parent=1 // pred_region
      %s28 = sadd.s32 0, 0
      %s29 = smul.u32 2, %s28
      %s31 = ssub.s32 256, 256
      %32 = vsyncadd [#allocation7], %s31
      %s33 = smul.addr %s29, 128
      %s34 = scalar_lea.hbm %s1, %s33
      %s35 = sshll.u32 [#allocation6], 4
      %s36 = int_to_ptr.vmem [resolvable:$true] %s35
      %41 = dma.hbm_to_vmem [thread:$0]  %s34, 256, %s36, [#allocation7], 128, 128, 8
    $region9: #{tpu_custom_call.1} parent=1 // pred_fallthru
      _
    // Predicated region
    $region10: #{tpu_custom_call.1} parent=1 // pred_check
      _
    $region11: #{tpu_custom_call.1} parent=1 // pred_check_branch
      %43 = sbr.rel (0) target = $region13
    $region12: #{tpu_custom_call.1} parent=1 // pred_region
      %44 = dma.done [#allocation4], 256
    $region13: #{tpu_custom_call.1} parent=1 // pred_fallthru
      _
    // Predicated region
    $region14: #{tpu_custom_call.1} parent=1 // pred_check
      _
    $region15: #{tpu_custom_call.1} parent=1 // pred_check_branch
      %46 = sbr.rel (0) target = $region17
    $region16: #{tpu_custom_call.1} parent=1 // pred_region
      %47 = dma.done [#allocation7], 256
    $region17: #{tpu_custom_call.1} parent=1 // pred_fallthru
      _
    %s48 = sadd.s32 0, 0
    %s49 = smul.u32 2, %s48
    %s50 = sadd.s32 0, 0
    %s51 = smul.u32 2, %s50
    %p52 = scmp.eq.s32.totalorder 0, 0
    // Predicated region
    $region18: #{tpu_custom_call.1} parent=1 // pred_check
      %p53 = pneg %p52
    $region19: #{tpu_custom_call.1} parent=1 // pred_check_branch
      %55 = sbr.rel (%p53) target = $region21
    $region20: #{tpu_custom_call.1} parent=1 // pred_region
      %56 = vst [vmem:[#allocation2] sm:$0xff] 0.0
      %57 = vst [vmem:[#allocation2 + $0x8] sm:$0xff] 0.0
      %58 = vst [vmem:[#allocation2 + $0x10] sm:$0xff] 0.0
    $region21: #{tpu_custom_call.1} parent=1 // pred_fallthru
      _
    %v59 = vld [vmem:[#allocation3] sm:$0xff]
    %v60 = vld [vmem:[#allocation3 + $0x8] sm:$0xff]
    %v61 = vld [vmem:[#allocation6] sm:$0xff]
    %v62 = vld [vmem:[#allocation6 + $0x8] sm:$0xff]
    %v63 = vmul.f32 %v59, 0.5
    %v64 = vmul.f32 %v60, 0.5
    %v65 = vtanh.pop %v63
    %v66 = vtanh.pop %v64
    %v67 = vadd.f32 %v65, 1.0
    %v68 = vadd.f32 %v66, 1.0
    %v69 = vmul.f32 %v67, 0.5
    %v70 = vmul.f32 %v68, 0.5
    %v71 = vld [vmem:[#allocation2] sm:$0xff]
    %v72 = vmul.f32 %v69, %v61
    %v73 = vmul.f32 %v70, %v62
    %v74 = vadd.f32 %v72, %v73
    %v75 = vadd.f32 %v71, %v74
    %76 = vst [vmem:[#allocation2] sm:$0xff] %v75
    %s77 = scalar_lea.vmem [#allocation2], 8
    %v78 = vld [vmem:[%s77] sm:$0xff]
    %v79 = vadd.f32 %v69, %v70
    %v80 = vadd.f32 %v78, %v79
    %81 = vst [vmem:[%s77] sm:$0xff] %v80
    %s82 = scalar_lea.vmem [#allocation2], 16
    %v83 = vld [vmem:[%s82] sm:$0xff]
    %v84 = vadd.f32 %v61, %v62
    %v85 = vadd.f32 %v83, %v84
    %86 = vst [vmem:[%s82] sm:$0xff] %v85
    // Predicated region
    $region22: #{tpu_custom_call.1} parent=1 // pred_check
      %p87 = pneg %p52
    $region23: #{tpu_custom_call.1} parent=1 // pred_check_branch
      %89 = sbr.rel (%p87) target = $region25
    $region24: #{tpu_custom_call.1} parent=1 // pred_region
      %v90 = vld [vmem:[#allocation2] sm:$0xff]
      %v91 = vld [vmem:[#allocation2 + $0x8] sm:$0xff]
      %v92 = vld [vmem:[#allocation2 + $0x10] sm:$0xff]
      %93 = vst [vmem:[#allocation8] sm:$0xff] %v90
      %94 = vst [vmem:[#allocation8 + $0x8] sm:$0xff] %v91
      %95 = vst [vmem:[#allocation8 + $0x10] sm:$0xff] %v92
    $region25: #{tpu_custom_call.1} parent=1 // pred_fallthru
      _
    // Predicated region
    $region26: #{tpu_custom_call.1} parent=1 // pred_check
      _
    $region27: #{tpu_custom_call.1} parent=1 // pred_check_branch
      %97 = sbr.rel (0) target = $region29
    $region28: #{tpu_custom_call.1} parent=1 // pred_region
      %s99 = ssub.s32 384, 384
      %100 = vsyncadd [#allocation5], %s99
      %s101 = sshll.u32 [#allocation8], 4
      %s102 = int_to_ptr.vmem [resolvable:$true] %s101
      %107 = dma.vmem_to_hbm [thread:$0]  %s102, 384, %s2, [#allocation5], 128, 128, 8
    $region29: #{tpu_custom_call.1} parent=1 // pred_fallthru
      _
    // Predicated region
    $region30: #{tpu_custom_call.1} parent=1 // pred_check
      _
    $region31: #{tpu_custom_call.1} parent=1 // pred_check_branch
      %109 = sbr.rel (0) target = $region33
    $region32: #{tpu_custom_call.1} parent=1 // pred_region
      %110 = dma.done [#allocation5], 384
    $region33: #{tpu_custom_call.1} parent=1 // pred_fallthru
      _
    %111 = vsyncpa [#allocation4], 1
    %112 = vsyncpa [#allocation7], 1
    %113 = vsyncpa [#allocation5], 1

</llo_original>
